<compile_context>
chip_gen: v7x
topology: tpu7x:2x2x1
jax: 0.10.0
libtpu: 0.0.40
codegen_flags: <defaults>
</compile_context>

<pallas_src>
import functools

import jax
import jax.numpy as jnp
from jax.experimental import pallas as pl
from jax.experimental.pallas import tpu as pltpu


def _rmsnorm_kernel(x_ref, w_ref, o_ref, *, eps, inv_d):
    x = x_ref[...].astype(jnp.float32)              # (tile_rows, Dblk)
    w = w_ref[...]                                  # (1, Dblk), already f32
    # Sum (not mean) over the (possibly padded) feature axis; padded columns
    # are zeros, so sum * (1/true_d_model) is the exact mean over d_model.
    ss = jnp.sum(x * x, axis=-1, keepdims=True)     # (tile_rows, 1)
    inv_rms = jax.lax.rsqrt(ss * inv_d + eps)       # EUP
    o_ref[...] = (x * inv_rms * w).astype(o_ref.dtype)


def _sublane_multiple(dtype) -> int:
    """Rows per packed sublane group: 8 for 4-byte, 16 for 2-byte, 32 for 1-byte."""
    itemsize = jnp.dtype(dtype).itemsize
    return 8 * max(1, 4 // max(itemsize, 1))


def _default_vmem_limit_bytes() -> int:
    """~3/4 of physical VMEM: ~96 MiB on 128 MiB parts, ~48 MiB on 64 MiB v7x."""
    cap = 64 * 1024 * 1024
    try:
        info = pltpu.get_tpu_info()
        cap = int(getattr(info, "vmem_capacity_bytes", cap)) or cap
    except Exception:
        pass
    return max(32 * 1024 * 1024, min((3 * cap) // 4, 100 * 1024 * 1024))


def _pick_row_tile(rows: int, d_blk: int, dtype, vmem_budget_bytes: int) -> int:
    """Largest sublane-aligned row tile whose per-step working set fits the budget."""
    itemsize = jnp.dtype(dtype).itemsize
    # Double-buffered x tile + double-buffered out tile + ~4 live f32 slabs
    # (upcast, x*x, x*inv_rms, *w) -- deliberately generous so the same
    # accounting cannot spill on v7x's 64 MiB VMEM with bf16/int8 inputs.
    per_row_bytes = d_blk * (4 * itemsize + 4 * 4)
    mult = _sublane_multiple(dtype)
    budget_rows = vmem_budget_bytes // max(per_row_bytes, 1)
    # Byte-based cap: at least ~4 MiB of x per block (or 1024 rows if that is
    # already bigger) so narrow-D shapes still amortize per-step overhead.
    cap_rows = max(1024, (4 * 1024 * 1024) // max(d_blk * itemsize, 1))
    tile = min(budget_rows, cap_rows) // mult * mult
    tile = max(mult, tile)
    # Don't make the block larger than the (sublane-rounded) number of rows.
    rows_up = ((rows + mult - 1) // mult) * mult
    return max(mult, min(tile, rows_up))


def rmsnorm(x: jax.Array, weight: jax.Array, eps: float = 1e-5,
            row_tile: int | None = None,
            vmem_limit_bytes: int | None = None) -> jax.Array:
    """RMSNorm over the last axis of x, scaled by weight (shape (d_model,))."""
    orig_shape = x.shape
    d_model = orig_shape[-1]
    if weight.shape != (d_model,):
        raise ValueError(
            f"weight must have shape ({d_model},), got {weight.shape}")

    x2d = x.reshape(-1, d_model)
    rows = x2d.shape[0]

    # Feature-axis blocking: pad only tiny D (<128); otherwise use the true
    # feature extent as the block's last dim (masked tail-lane stores beat two
    # extra full-tensor HBM passes from a pad + slice).
    if d_model < 128:
        d_blk = 128
        feat_pad = d_blk - d_model
        x2d = jnp.pad(x2d, ((0, 0), (0, feat_pad)))
    else:
        d_blk = d_model
        feat_pad = 0

    w_f32 = weight.astype(jnp.float32).reshape(1, d_model)
    if feat_pad:
        w_f32 = jnp.pad(w_f32, ((0, 0), (0, feat_pad)))

    if vmem_limit_bytes is None:
        vmem_limit_bytes = _default_vmem_limit_bytes()
    if row_tile is None:
        # Small (1/8) safety margin for Pallas-internal scratch/semaphores; the
        # per-row formula already counts double buffering and f32 temps.
        row_tile = _pick_row_tile(rows, d_blk, x.dtype,
                                  vmem_budget_bytes=(7 * vmem_limit_bytes) // 8)

    # No host-side row padding: cdiv grid, Pallas masks the partial tail block.
    grid = (pl.cdiv(rows, row_tile),)

    kernel = functools.partial(_rmsnorm_kernel,
                               eps=float(eps), inv_d=1.0 / float(d_model))

    itemsize = jnp.dtype(x.dtype).itemsize
    cost = pl.CostEstimate(
        flops=4 * rows * d_model,            # square, sum, scale, weight-mul
        transcendentals=rows,                # one rsqrt per row
        bytes_accessed=2 * rows * d_model * itemsize + d_model * 4,
    )

    out = pl.pallas_call(
        kernel,
        out_shape=jax.ShapeDtypeStruct((rows, d_blk), x.dtype),
        grid_spec=pltpu.PrefetchScalarGridSpec(
            num_scalar_prefetch=0,
            grid=grid,
            in_specs=[
                pl.BlockSpec((row_tile, d_blk), lambda i: (i, 0)),
                pl.BlockSpec((1, d_blk), lambda i: (0, 0)),  # weight stays resident
            ],
            out_specs=pl.BlockSpec((row_tile, d_blk), lambda i: (i, 0)),
        ),
        compiler_params=pltpu.CompilerParams(
            dimension_semantics=("parallel",),   # shards rows across TCs on v7x
            vmem_limit_bytes=int(vmem_limit_bytes)),
        cost_estimate=cost,
    )(x2d, w_f32)

    if feat_pad:
        out = out[:, :d_model]
    return out.reshape(orig_shape)


if __name__ == "__main__":
    key = jax.random.PRNGKey(0)
    eps = 1e-5

    def ref(x, w):
        # Mirrors the torch forward exactly.
        rms = jnp.sqrt(jnp.mean(x ** 2, axis=-1, keepdims=True) + eps)
        return x / rms * w

    # Primary check: small transformer-like shape (tiny-D pad path).
    batch, seq, d_model = 2, 8, 32
    k1, k2 = jax.random.split(key)
    x = jax.random.normal(k1, (batch, seq, d_model), dtype=jnp.float32)
    weight = jnp.ones((d_model,), dtype=jnp.float32)   # RMSNorm init: ones
    y = jax.block_until_ready(rmsnorm(x, weight, eps))
    assert jnp.allclose(y, ref(x, weight), atol=1e-5, rtol=1e-5), \
        "mismatch vs reference (d_model=32)"

    # Secondary check: non-multiple-of-128 feature width exercises the new
    # unpadded full-extent-last-dim path (masked tail-lane stores).
    d2 = 160
    x2 = jax.random.normal(k2, (batch, seq, d2), dtype=jnp.float32)
    w2 = jnp.ones((d2,), dtype=jnp.float32)
    y2 = jax.block_until_ready(rmsnorm(x2, w2, eps))
    assert jnp.allclose(y2, ref(x2, w2), atol=1e-5, rtol=1e-5), \
        "mismatch vs reference (d_model=160)"

    print("KERNEL_OK")
</pallas_src>

<mosaic_0001>
module attributes {stable_mosaic.version = 11 : i64} {
  func.func @_rmsnorm_kernel(%arg0: i32, %arg1: memref<16x128xf32, #tpu.memory_space<vmem>>, %arg2: memref<1x128xf32, #tpu.memory_space<vmem>>, %arg3: memref<16x128xf32, #tpu.memory_space<vmem>>) attributes {dimension_semantics = [#tpu.dimension_semantics<parallel>], iteration_bounds = array<i64: 1>, scalar_prefetch = 0 : i64, scratch_operands = 0 : i64, tpu.core_type = #tpu.core_type<tc>, window_params = [{transform_indices = @transform_0, window_bounds = array<i64: 16, 128>}, {pipeline_mode = #tpu.pipeline_mode<synchronous>, transform_indices = @transform_1, window_bounds = array<i64: 1, 128>}, {transform_indices = @transform_2, window_bounds = array<i64: 16, 128>}]} {
    %c0 = arith.constant 0 : index
    %c0_0 = arith.constant 0 : index
    %0 = vector.load %arg1[%c0, %c0_0] : memref<16x128xf32, #tpu.memory_space<vmem>>, vector<16x128xf32>
    %c0_1 = arith.constant 0 : index
    %c0_2 = arith.constant 0 : index
    %1 = vector.load %arg2[%c0_1, %c0_2] : memref<1x128xf32, #tpu.memory_space<vmem>>, vector<1x128xf32>
    %2 = arith.mulf %0, %0 : vector<16x128xf32>
    %cst = arith.constant dense<0.000000e+00> : vector<16xf32>
    %3 = vector.multi_reduction <add>, %2, %cst [1] : vector<16x128xf32> to vector<16xf32>
    %4 = vector.shape_cast %3 : vector<16xf32> to vector<16x1xf32>
    %cst_3 = arith.constant 3.125000e-02 : f32
    %5 = vector.broadcast %cst_3 : f32 to vector<16x1xf32>
    %6 = arith.mulf %4, %5 : vector<16x1xf32>
    %cst_4 = arith.constant 9.99999974E-6 : f32
    %7 = vector.broadcast %cst_4 : f32 to vector<16x1xf32>
    %8 = arith.addf %6, %7 : vector<16x1xf32>
    %9 = math.rsqrt %8 : vector<16x1xf32>
    %10 = vector.broadcast %9 : vector<16x1xf32> to vector<16x128xf32>
    %11 = arith.mulf %0, %10 : vector<16x128xf32>
    %12 = vector.broadcast %1 : vector<1x128xf32> to vector<16x128xf32>
    %13 = arith.mulf %11, %12 : vector<16x128xf32>
    %c0_5 = arith.constant 0 : index
    %c0_6 = arith.constant 0 : index
    %14 = vector.load %arg3[%c0_5, %c0_6] : memref<16x128xf32, #tpu.memory_space<vmem>>, vector<16x128xf32>
    tpu.vector_store %arg3[%c0_5, %c0_6], %13 {strides = array<i32>} : memref<16x128xf32, #tpu.memory_space<vmem>>, vector<16x128xf32>,
    return
  }
  func.func @transform_0(%arg0: i32) -> (i32, i32) {
    %c0_i32 = arith.constant 0 : i32
    %c0_i32_0 = arith.constant 0 : i32
    return %arg0, %c0_i32 : i32, i32
  }
  func.func @transform_1(%arg0: i32) -> (i32, i32) {
    %c0_i32 = arith.constant 0 : i32
    %c0_i32_0 = arith.constant 0 : i32
    %c0_i32_1 = arith.constant 0 : i32
    return %c0_i32, %c0_i32_0 : i32, i32
  }
  func.func @transform_2(%arg0: i32) -> (i32, i32) {
    %c0_i32 = arith.constant 0 : i32
    %c0_i32_0 = arith.constant 0 : i32
    return %arg0, %c0_i32 : i32, i32
  }
}

</mosaic_0001>

<llo_original>
// kernel: tpu_custom_call.1
$region0: #{tpu_custom_call.1}
  #allocation0 [shape = 'u32[]', space=smem, size = 0x4, offset = 0x4, fixed_abs, tag = 'smem constant byte address 0x4 - core index']
  #allocation1 [shape = 'u32[144,128]{1,0:T(1,128)}', space=vmem, size = 0x12000, scoped, tag = 'internal scratch']
  %s0 = inlined_call_operand.hbm [shape: f32[16,128], index: 0, kind: input, shape index: {}]
  %s1 = inlined_call_operand.vmem [shape: f32[1,128], index: 1, kind: input, shape index: {}]
  %s2 = inlined_call_operand.hbm [shape: f32[16,128], index: 2, kind: output, shape index: {}]
  %s3 = sld [smem:[#allocation0]]
  $region22: #{tpu_custom_call.1} parent=0
    _
  %s5 = ssub.s32 1, %s3
  %s6 = scalar_select 0, %s5, %s3
  $region1: #{tpu_custom_call.1} parent=0
    #allocation2 [shape = 'u8[8192]{0}', space=vmem, size = 0x2000, scoped, tag = 'input window, operand 0, single buffered']
    #allocation3 [shape = 's32[1]{0}', space=sflag, size = 0x4, scoped, tag = 'scoped memory for tpu_custom_call.1']
    #allocation4 [shape = 's32[1]{0}', space=sflag, size = 0x4, scoped, tag = 'scoped memory for tpu_custom_call.1']
    #allocation5 [shape = 'u8[8192]{0}', space=vmem, size = 0x2000, scoped, tag = 'output window, operand 0, single buffered']
    %7 = vsyncpa [#allocation3], 0
    %8 = vsyncpa [#allocation4], 0
    // Predicated region
    $region2: #{tpu_custom_call.1} parent=1 // pred_check
      _
    $region3: #{tpu_custom_call.1} parent=1 // pred_check_branch
      %10 = sbr.rel (0) target = $region5
    $region4: #{tpu_custom_call.1} parent=1 // pred_region
      %s12 = ssub.s32 256, 256
      %13 = vsyncadd [#allocation3], %s12
      %s14 = sshll.u32 [#allocation2], 4
      %s15 = int_to_ptr.vmem [resolvable:$true] %s14
      %20 = dma.hbm_to_vmem [thread:$0]  %s0, 256, %s15, [#allocation3], 128, 128, 8
    $region5: #{tpu_custom_call.1} parent=1 // pred_fallthru
      _
    // Predicated region
    $region6: #{tpu_custom_call.1} parent=1 // pred_check
      _
    $region7: #{tpu_custom_call.1} parent=1 // pred_check_branch
      %22 = sbr.rel (0) target = $region9
    $region8: #{tpu_custom_call.1} parent=1 // pred_region
      _
    $region9: #{tpu_custom_call.1} parent=1 // pred_fallthru
      _
    // Predicated region
    $region10: #{tpu_custom_call.1} parent=1 // pred_check
      _
    $region11: #{tpu_custom_call.1} parent=1 // pred_check_branch
      %24 = sbr.rel (0) target = $region13
    $region12: #{tpu_custom_call.1} parent=1 // pred_region
      %25 = dma.done [#allocation3], 256
    $region13: #{tpu_custom_call.1} parent=1 // pred_fallthru
      _
    %v26 = vld [vmem:[#allocation2] sm:$0xff]
    %v27 = vld [vmem:[#allocation2 + $0x8] sm:$0xff]
    %v28 = vld [vmem:[%s1] sm:$0x1]
    %v29 = vmul.f32 %v26, %v26
    %v30 = vmul.f32 %v27, %v27
    %31 = vadd.xlane.f32.xlu0 %v29
    %v32 = vpop.xlane.xlu0 %31
    %33 = vadd.xlane.f32.xlu0 %v30
    %v34 = vpop.xlane.xlu0 %33
    %v35 = vmul.f32 %v32, 0.03125
    %v36 = vmul.f32 %v34, 0.03125
    %v37 = vadd.f32 %v35, 1e-05
    %v38 = vadd.f32 %v36, 1e-05
    %v39 = vrsqrt.pop %v37
    %v40 = vrsqrt.pop %v38
    %v41 = vmul.f32 %v26, %v39
    %v42 = vmul.f32 %v27, %v40
    %v44 = vlaneseq
    %v45 = vshrl.u32 %v44, 7
    %v46 = vsub.s32 0, %v45
    %v47 = vrot.slane %v28, %v46
    %v49 = vmul.f32 %v41, %v47
    %v50 = vmul.f32 %v42, %v47
    %51 = vst [vmem:[#allocation5] sm:$0xff] %v49
    %52 = vst [vmem:[#allocation5 + $0x8] sm:$0xff] %v50
    // Predicated region
    $region14: #{tpu_custom_call.1} parent=1 // pred_check
      _
    $region15: #{tpu_custom_call.1} parent=1 // pred_check_branch
      %54 = sbr.rel (0) target = $region17
    $region16: #{tpu_custom_call.1} parent=1 // pred_region
      %s56 = ssub.s32 256, 256
      %57 = vsyncadd [#allocation4], %s56
      %s58 = sshll.u32 [#allocation5], 4
      %s59 = int_to_ptr.vmem [resolvable:$true] %s58
      %64 = dma.vmem_to_hbm [thread:$0]  %s59, 256, %s2, [#allocation4], 128, 128, 8
    $region17: #{tpu_custom_call.1} parent=1 // pred_fallthru
      _
    // Predicated region
    $region18: #{tpu_custom_call.1} parent=1 // pred_check
      _
    $region19: #{tpu_custom_call.1} parent=1 // pred_check_branch
      %66 = sbr.rel (0) target = $region21
    $region20: #{tpu_custom_call.1} parent=1 // pred_region
      %67 = dma.done [#allocation4], 256
    $region21: #{tpu_custom_call.1} parent=1 // pred_fallthru
      _
    %68 = vsyncpa [#allocation3], 1
    %69 = vsyncpa [#allocation4], 1

</llo_original>
